<compile_context>
chip_gen: v7x
topology: tpu7x:2x2x1
jax: 0.10.0
libtpu: 0.0.40
codegen_flags: <defaults>
</compile_context>

<pallas_src>
import functools

import jax
import jax.numpy as jnp
from jax import lax
from jax.experimental import pallas as pl
from jax.experimental.pallas import tpu as pltpu


def _pick_tile(n, candidates):
    """Largest candidate tile that divides n; fall back to the full extent."""
    for t in candidates:
        if n % t == 0:
            return t
    return n


# --------------------- pass 1: row L2-normalize (once), bf16 out ---------------------

def _normalize_kernel(x_ref, o_ref):
    x = x_ref[...].astype(jnp.float32)                       # (tr, D)
    sumsq = jnp.sum(x * x, axis=1, keepdims=True)
    inv = lax.rsqrt(jnp.maximum(sumsq, 1e-24))               # == 1 / max(||x||, 1e-12)
    o_ref[...] = (x * inv).astype(o_ref.dtype)


def _normalize_rows(x):
    n, d = x.shape
    tr = _pick_tile(n, (256, 128, 64, 32, 16))               # multiples of 16 (bf16 sublane)
    return pl.pallas_call(
        _normalize_kernel,
        out_shape=jax.ShapeDtypeStruct((n, d), jnp.bfloat16),
        grid=(n // tr,),
        in_specs=[pl.BlockSpec((tr, d), lambda r: (r, 0))],
        out_specs=pl.BlockSpec((tr, d), lambda r: (r, 0)),
        compiler_params=pltpu.CompilerParams(dimension_semantics=("parallel",)),
    )(x)


# --------------------- pass 2: tiled similarity / loss accumulation ---------------------

def _loss_kernel(xq_ref, xk_ref, out_ref, rowsum_acc, diag_acc, *, inv_tau, bsz, tq, tk):
    i = pl.program_id(0)
    k = pl.program_id(1)

    @pl.when(k == 0)
    def _():
        rowsum_acc[...] = jnp.zeros_like(rowsum_acc)
        diag_acc[...] = jnp.zeros_like(diag_acc)

    # Fold 1/tau into the q operand (tq*D work), keep bf16 MXU inputs + f32 accumulation.
    q = (xq_ref[...].astype(jnp.float32) * inv_tau).astype(jnp.bfloat16)   # (tq, D)
    kt = xk_ref[...]                                                       # (tk, D) bf16

    s = lax.dot_general(q, kt, dimension_numbers=(((1,), (1,)), ((), ())),
                        preferred_element_type=jnp.float32)                # (tq, tk)
    p = jnp.exp(s)

    # Thin index vectors -> broadcast compares (no NxN int32 iotas, no NxN mod).
    row_ids = i * tq + lax.broadcasted_iota(jnp.int32, (tq, 1), 0)
    col_ids = k * tk + lax.broadcasted_iota(jnp.int32, (1, tk), 1)
    if bsz & (bsz - 1) == 0:                       # B is a power of two: single VALU op
        row_m = row_ids & (bsz - 1)
        col_m = col_ids & (bsz - 1)
    else:
        row_m = row_ids % bsz
        col_m = col_ids % bsz

    p = jnp.where(row_ids != col_ids, p, 0.0)      # zero the main diagonal
    rowsum_acc[...] += jnp.sum(p, axis=1, keepdims=True)
    # Same-sample (cross-modal positive) columns; diagonal already zeroed above.
    diag_acc[...] += jnp.sum(jnp.where(row_m == col_m, p, 0.0), axis=1, keepdims=True)

    @pl.when(k == pl.num_programs(1) - 1)
    def _():
        # per-row log(diag1 / row_sum); -mean and the symmetric 2x happen in the wrapper.
        out_ref[...] = jnp.log(diag_acc[...]) - jnp.log(rowsum_acc[...])


def cross_modal_loss(x, *, tau=0.22, modal_num=2):
    """x: (modal_num * batch, feat_dim) float array. Returns scalar f32 loss."""
    n, d = x.shape
    assert n % modal_num == 0
    bsz = n // modal_num
    # TODO(synk): diag1 can be zero (log -> -inf) when modal_num == 1; this matches the
    # PyTorch reference, so no guard is added.

    xn = _normalize_rows(x)                                   # (N, D) bf16, unit rows

    tq = _pick_tile(n, (256, 128, 64, 32, 16))
    tk = _pick_tile(n, (512, 256, 128, 64, 32, 16))

    kernel = functools.partial(_loss_kernel, inv_tau=1.0 / tau, bsz=bsz, tq=tq, tk=tk)
    per_row = pl.pallas_call(
        kernel,
        out_shape=jax.ShapeDtypeStruct((n, 1), jnp.float32),
        grid=(n // tq, n // tk),
        in_specs=[pl.BlockSpec((tq, d), lambda i, k: (i, 0)),   # query rows (resident over k)
                  pl.BlockSpec((tk, d), lambda i, k: (k, 0))],  # key rows (streamed)
        out_specs=pl.BlockSpec((tq, 1), lambda i, k: (i, 0)),
        scratch_shapes=[pltpu.VMEM((tq, 1), jnp.float32),       # row_sum accumulator
                        pltpu.VMEM((tq, 1), jnp.float32)],      # cross-modal positive accumulator
        compiler_params=pltpu.CompilerParams(
            dimension_semantics=("parallel", "arbitrary")),
    )(xn, xn)

    # Symmetry of the zero-diagonal exp-similarity => loss2 == loss1, so return 2 * loss1.
    return -2.0 * jnp.mean(per_row)


# --------------------- pure-JAX reference (f32), for validation ---------------------

def _reference_loss(x, tau=0.22, modal_num=2):
    x = x.astype(jnp.float32)
    x = x / jnp.maximum(jnp.linalg.norm(x, axis=1, keepdims=True), 1e-12)
    n = x.shape[0]
    b = n // modal_num
    sim = jnp.exp((x @ x.T) / tau)
    sim = sim - jnp.diag(jnp.diag(sim))
    sim_sum1 = sum(sim[:, v * b:(v + 1) * b] for v in range(modal_num))
    diag1 = jnp.concatenate([jnp.diag(sim_sum1[v * b:(v + 1) * b]) for v in range(modal_num)])
    loss1 = -jnp.mean(jnp.log(diag1 / jnp.sum(sim, axis=1)))
    sim_sum2 = sum(sim[v * b:(v + 1) * b] for v in range(modal_num))
    diag2 = jnp.concatenate([jnp.diag(sim_sum2[:, v * b:(v + 1) * b]) for v in range(modal_num)])
    loss2 = -jnp.mean(jnp.log(diag2 / jnp.sum(sim, axis=1)))
    return loss1 + loss2


if __name__ == "__main__":
    # Small, deterministic example: modal_num=2, per-modality batch=8, feat_dim=32.
    modal_num = 2
    batch = 8
    feat_dim = 32
    tau = 0.22

    key = jax.random.PRNGKey(0)
    x = jax.random.normal(key, (modal_num * batch, feat_dim), dtype=jnp.float32)

    loss = jax.block_until_ready(cross_modal_loss(x, tau=tau, modal_num=modal_num))
    ref = jax.block_until_ready(_reference_loss(x, tau=tau, modal_num=modal_num))

    # bf16 MXU inputs (f32 accumulation) -> loosened tolerance vs the pure-f32 reference.
    assert jnp.allclose(loss, ref, rtol=2e-2, atol=2e-2), (loss, ref)

    print("KERNEL_OK")
</pallas_src>

<mosaic_0001>
module attributes {stable_mosaic.version = 11 : i64} {
  func.func @_normalize_kernel(%arg0: i32, %arg1: memref<16x32xf32, #tpu.memory_space<vmem>>, %arg2: memref<16x32xbf16, #tpu.memory_space<vmem>>) attributes {dimension_semantics = [#tpu.dimension_semantics<parallel>], iteration_bounds = array<i64: 1>, scalar_prefetch = 0 : i64, scratch_operands = 0 : i64, tpu.core_type = #tpu.core_type<tc>, window_params = [{transform_indices = @transform_0, window_bounds = array<i64: 16, 32>}, {transform_indices = @transform_1, window_bounds = array<i64: 16, 32>}]} {
    %c0 = arith.constant 0 : index
    %c0_0 = arith.constant 0 : index
    %0 = vector.load %arg1[%c0, %c0_0] : memref<16x32xf32, #tpu.memory_space<vmem>>, vector<16x32xf32>
    %1 = arith.mulf %0, %0 : vector<16x32xf32>
    %cst = arith.constant dense<0.000000e+00> : vector<16xf32>
    %2 = vector.multi_reduction <add>, %1, %cst [1] : vector<16x32xf32> to vector<16xf32>
    %3 = vector.shape_cast %2 : vector<16xf32> to vector<16x1xf32>
    %cst_1 = arith.constant 1.000000e-24 : f32
    %4 = vector.broadcast %cst_1 : f32 to vector<16x1xf32>
    %5 = arith.maximumf %3, %4 : vector<16x1xf32>
    %6 = math.rsqrt %5 : vector<16x1xf32>
    %7 = vector.broadcast %6 : vector<16x1xf32> to vector<16x32xf32>
    %8 = arith.mulf %0, %7 : vector<16x32xf32>
    %9 = arith.truncf %8 : vector<16x32xf32> to vector<16x32xbf16>
    %c0_2 = arith.constant 0 : index
    %c0_3 = arith.constant 0 : index
    %10 = vector.load %arg2[%c0_2, %c0_3] : memref<16x32xbf16, #tpu.memory_space<vmem>>, vector<16x32xbf16>
    tpu.vector_store %arg2[%c0_2, %c0_3], %9 {strides = array<i32>} : memref<16x32xbf16, #tpu.memory_space<vmem>>, vector<16x32xbf16>,
    return
  }
  func.func @transform_0(%arg0: i32) -> (i32, i32) {
    %c0_i32 = arith.constant 0 : i32
    %c0_i32_0 = arith.constant 0 : i32
    return %arg0, %c0_i32 : i32, i32
  }
  func.func @transform_1(%arg0: i32) -> (i32, i32) {
    %c0_i32 = arith.constant 0 : i32
    %c0_i32_0 = arith.constant 0 : i32
    return %arg0, %c0_i32 : i32, i32
  }
}

</mosaic_0001>

<llo_original>
// kernel: tpu_custom_call.1
$region0: #{tpu_custom_call.1}
  #allocation0 [shape = 'u32[]', space=smem, size = 0x4, offset = 0x4, fixed_abs, tag = 'smem constant byte address 0x4 - core index']
  #allocation1 [shape = 'u32[144,128]{1,0:T(1,128)}', space=vmem, size = 0x12000, scoped, tag = 'internal scratch']
  %s0 = inlined_call_operand.hbm [shape: f32[16,32], index: 0, kind: input, shape index: {}]
  %s1 = inlined_call_operand.hbm [shape: bf16[16,32], index: 1, kind: output, shape index: {}]
  %s2 = sld [smem:[#allocation0]]
  $region18: #{tpu_custom_call.1} parent=0
    _
  %s4 = ssub.s32 1, %s2
  %s5 = scalar_select 0, %s4, %s2
  $region1: #{tpu_custom_call.1} parent=0
    #allocation2 [shape = 'u8[8192]{0}', space=vmem, size = 0x2000, scoped, tag = 'input window, operand 0, single buffered']
    #allocation3 [shape = 's32[1]{0}', space=sflag, size = 0x4, scoped, tag = 'scoped memory for tpu_custom_call.1']
    #allocation4 [shape = 's32[1]{0}', space=sflag, size = 0x4, scoped, tag = 'scoped memory for tpu_custom_call.1']
    #allocation5 [shape = 'u8[4096]{0}', space=vmem, size = 0x1000, scoped, tag = 'output window, operand 0, single buffered']
    %6 = vsyncpa [#allocation3], 0
    %7 = vsyncpa [#allocation4], 0
    // Predicated region
    $region2: #{tpu_custom_call.1} parent=1 // pred_check
      _
    $region3: #{tpu_custom_call.1} parent=1 // pred_check_branch
      %9 = sbr.rel (0) target = $region5
    $region4: #{tpu_custom_call.1} parent=1 // pred_region
      %s11 = ssub.s32 256, 256
      %12 = vsyncadd [#allocation3], %s11
      %s13 = sshll.u32 [#allocation2], 4
      %s14 = int_to_ptr.vmem [resolvable:$true] %s13
      %19 = dma.hbm_to_vmem [thread:$0]  %s0, 256, %s14, [#allocation3], 128, 128, 8
    $region5: #{tpu_custom_call.1} parent=1 // pred_fallthru
      _
    // Predicated region
    $region6: #{tpu_custom_call.1} parent=1 // pred_check
      _
    $region7: #{tpu_custom_call.1} parent=1 // pred_check_branch
      %21 = sbr.rel (0) target = $region9
    $region8: #{tpu_custom_call.1} parent=1 // pred_region
      %22 = dma.done [#allocation3], 256
    $region9: #{tpu_custom_call.1} parent=1 // pred_fallthru
      _
    %v23 = vld [vmem:[#allocation2] sm:$0xff]
    %v24 = vld [vmem:[#allocation2 + $0x8] sm:$0xff]
    %v25 = vmul.f32 %v23, %v23
    %v26 = vmul.f32 %v24, %v24
    %vm27 = vcmask 261120
    %v28 = vsel %vm27, %v25, 0.0
    %29 = vadd.xlane.f32.xlu0 %v28
    %v30 = vpop.xlane.xlu0 %29
    %v31 = vsel %vm27, %v26, 0.0
    %32 = vadd.xlane.f32.xlu0 %v31
    %v33 = vpop.xlane.xlu0 %32
    %v34 = vmax.f32 %v30, 1e-24
    %v35 = vmax.f32 %v33, 1e-24
    %v36 = vrsqrt.pop %v34
    %v37 = vrsqrt.pop %v35
    %v38 = vmul.f32 %v23, %v36
    %v39 = vmul.f32 %v24, %v37
    %v40 = vpack.c.bf16 %v39, %v38
    %v42 = vunpack.c.l.b16 %v40
    %v43 = vunpack.c.h.b16 %v40
    %v44 = vpack.c.b16 %v42, %v42
    %v45 = vpack.c.b16 %v43, %v43
    %vm48 = vcmask 257024
    %49 = vst.msk [vmem:[#allocation5] sm:$0xf] %vm48, %v44
    %50 = vst.msk [vmem:[#allocation5 + $0x4] sm:$0xf] %vm48, %v45
    // Predicated region
    $region10: #{tpu_custom_call.1} parent=1 // pred_check
      _
    $region11: #{tpu_custom_call.1} parent=1 // pred_check_branch
      %52 = sbr.rel (0) target = $region13
    $region12: #{tpu_custom_call.1} parent=1 // pred_region
      %s54 = ssub.s32 128, 128
      %55 = vsyncadd [#allocation4], %s54
      %s56 = sshll.u32 [#allocation5], 4
      %s57 = int_to_ptr.vmem [resolvable:$true] %s56
      %62 = dma.vmem_to_hbm [thread:$0]  %s57, 128, %s1, [#allocation4], 64, 64, 4
    $region13: #{tpu_custom_call.1} parent=1 // pred_fallthru
      _
    // Predicated region
    $region14: #{tpu_custom_call.1} parent=1 // pred_check
      _
    $region15: #{tpu_custom_call.1} parent=1 // pred_check_branch
      %64 = sbr.rel (0) target = $region17
    $region16: #{tpu_custom_call.1} parent=1 // pred_region
      %65 = dma.done [#allocation4], 128
    $region17: #{tpu_custom_call.1} parent=1 // pred_fallthru
      _
    %66 = vsyncpa [#allocation3], 1
    %67 = vsyncpa [#allocation4], 1

</llo_original>
